<compile_context>
chip_gen: v7x
topology: tpu7x:2x2x1
jax: 0.10.0
libtpu: 0.0.40
codegen_flags: <defaults>
</compile_context>

<pallas_src>
import functools

import jax
import jax.numpy as jnp
from jax import lax
from jax.experimental import pallas as pl
from jax.experimental.pallas import tpu as pltpu


def _generator_kernel(x_ref, w_ref, b_ref, o_ref, m_sc, l_sc, *, vocab, tn, need_mask):
    # x_ref: (tm, D)  w_ref: (tn, D)  b_ref: (1, tn)  o_ref: (tm, tn)
    # m_sc, l_sc: (tm, 1) f32 running max / sum-exp scratch (live across the grid).
    p = pl.program_id(1)            # 0 = stats pass, 1 = write pass
    j = pl.program_id(2)            # vocab block index
    num_v = pl.num_programs(2)

    # Logits tile in f32: contract D of x with D of w (x @ w^T; no transpose
    # materialized in the wrapper; MXU accumulates in f32).
    logits = lax.dot_general(
        x_ref[...], w_ref[...],
        dimension_numbers=(((1,), (1,)), ((), ())),
        preferred_element_type=jnp.float32,
    ) + b_ref[...].astype(jnp.float32)

    @pl.when(jnp.logical_and(p == 0, j == 0))
    def _():
        m_sc[...] = jnp.full_like(m_sc[...], -jnp.inf)
        l_sc[...] = jnp.zeros_like(l_sc[...])

    def _update_stats(vals):
        # Online (flash-style) max / sum-exp accumulation, all in f32.
        m_prev = m_sc[...]
        m_new = jnp.maximum(m_prev, jnp.max(vals, axis=-1, keepdims=True))
        l_sc[...] = l_sc[...] * jnp.exp(m_prev - m_new) + jnp.sum(
            jnp.exp(vals - m_new), axis=-1, keepdims=True)
        m_sc[...] = m_new

    @pl.when(p == 0)
    def _():
        if need_mask:
            # Only the last (partial) vocab block needs masking, so that padded
            # weight rows never contaminate the row max / sum-exp.
            @pl.when(j == num_v - 1)
            def _():
                col = lax.broadcasted_iota(jnp.int32, logits.shape, 1) + j * tn
                _update_stats(jnp.where(col < vocab, logits, -jnp.inf))

            @pl.when(j != num_v - 1)
            def _():
                _update_stats(logits)
        else:
            _update_stats(logits)

    @pl.when(p == 1)
    def _():
        # Padded columns of a partial last block are written unmasked; Pallas
        # clips the out-of-bounds portion of the store.
        lse = m_sc[...] + jnp.log(l_sc[...])
        o_ref[...] = (logits - lse).astype(o_ref.dtype)


def _vmem_capacity_bytes():
    """Physical VMEM per TensorCore, with graceful fallbacks."""
    try:
        return int(pltpu.get_tpu_info().vmem_capacity_bytes)
    except Exception:
        pass
    try:
        kind = jax.devices()[0].device_kind.lower()
        if "v7" in kind:
            return 64 << 20
    except Exception:
        pass
    return 128 << 20


def transformer_generator(x, weight, bias, *, tm=1024, tn=512,
                          compute_dtype=None, out_dtype=None):
    """x: (batch, seq, model_dim); weight: (vocab, model_dim) (torch nn.Linear
    layout); bias: (vocab,).  Returns (batch, seq, vocab) log-probabilities.

    tm: row tile target (auto-shrunk to fit VMEM).  tn: vocab tile (multiple of
    128 so output stores are lane-dense).  compute_dtype defaults to bfloat16 for
    the matmul inputs (f32 accumulation / f32 softmax epilogue; ~1e-2 log-prob
    accuracy -- use jnp.float32 for exact loss computation).  Store the weight in
    compute_dtype to avoid a per-call cast.  out_dtype=jnp.bfloat16 halves output
    HBM writes if downstream accepts bf16 log-probs."""
    batch, seq, model_dim = x.shape
    vocab = weight.shape[0]
    assert weight.shape == (vocab, model_dim)
    assert bias.shape == (vocab,)

    M = batch * seq
    out_dtype = x.dtype if out_dtype is None else out_dtype
    if compute_dtype is None:
        compute_dtype = jnp.bfloat16

    x2d = x.reshape(M, model_dim).astype(compute_dtype)
    w = weight.astype(compute_dtype)          # kept (V, D); no transpose
    b2d = bias.astype(jnp.float32).reshape(1, vocab)

    isz = jnp.dtype(compute_dtype).itemsize
    osz = jnp.dtype(out_dtype).itemsize

    # --- generation-aware VMEM budget (leave headroom for Mosaic scratch) ---
    vmem_budget = int(_vmem_capacity_bytes() * 0.82)  # ~105 MiB v5e/v6e, ~52 MiB v7x

    # --- vocab tile: lane-dense stores (multiple of 128) or the full vocab ---
    if vocab <= tn:
        tn_eff = vocab
    else:
        tn_eff = max(128, (tn // 128) * 128)

    def vmem_estimate(tm_c):
        return (2 * tm_c * model_dim * isz        # x tile (double-buffered)
                + 2 * tn_eff * model_dim * isz    # weight tile (double-buffered)
                + 2 * tn_eff * 4                  # bias tile
                + 2 * tm_c * tn_eff * osz         # output tile
                + 2 * tm_c * 4                    # m/l scratch
                + (2 << 20))                      # slack

    # --- row tile: largest (multiple of 8, or full M) that fits the budget ---
    tm_eff = min(tm, M)
    if tm_eff < M:
        tm_eff = max(8, (tm_eff // 8) * 8)
    while tm_eff > 8 and vmem_estimate(tm_eff) > vmem_budget:
        tm_eff = max(8, ((tm_eff // 2 + 7) // 8) * 8)
    if tm_eff > M:
        tm_eff = M
    # v7x megacore: when M is large, keep >= 2 row tiles so both TensorCores get
    # work along the "parallel" axis (each tile still >= ~256 rows).
    if tm_eff >= M and M >= 512:
        tm_eff = ((M + 1) // 2 + 7) // 8 * 8

    num_m = pl.cdiv(M, tm_eff)
    num_v = pl.cdiv(vocab, tn_eff)
    need_mask = (vocab % tn_eff) != 0

    est = vmem_estimate(tm_eff)
    vmem_limit = int(min(max(est * 5 // 4, 32 << 20), vmem_budget))
    vmem_limit = max(vmem_limit, est)

    kernel = functools.partial(_generator_kernel,
                               vocab=vocab, tn=tn_eff, need_mask=need_mask)

    out2d = pl.pallas_call(
        kernel,
        out_shape=jax.ShapeDtypeStruct((M, vocab), out_dtype),
        grid_spec=pltpu.PrefetchScalarGridSpec(
            num_scalar_prefetch=0,
            grid=(num_m, 2, num_v),
            in_specs=[
                pl.BlockSpec((tm_eff, model_dim), lambda i, p, j: (i, 0)),
                pl.BlockSpec((tn_eff, model_dim), lambda i, p, j: (j, 0)),
                pl.BlockSpec((1, tn_eff), lambda i, p, j: (0, j)),
            ],
            # Pass 0 never stores; pin its output block to (i, 0) so the pipeline
            # does not write back untouched tiles (halves output HBM writes).
            out_specs=pl.BlockSpec((tm_eff, tn_eff), lambda i, p, j: (i, p * j)),
            scratch_shapes=[
                pltpu.VMEM((tm_eff, 1), jnp.float32),   # running max
                pltpu.VMEM((tm_eff, 1), jnp.float32),   # running sum-exp
            ],
        ),
        compiler_params=pltpu.CompilerParams(
            dimension_semantics=("parallel", "arbitrary", "arbitrary"),
            vmem_limit_bytes=vmem_limit,
        ),
    )(x2d, w, b2d)

    return out2d.reshape(batch, seq, vocab)


if __name__ == "__main__":
    # --- primary small test (shapes consistent with the module's forward) ---
    batch, seq, model_dim, vocab_size = 2, 8, 32, 32
    key = jax.random.PRNGKey(0)
    kx, kw, kb = jax.random.split(key, 3)

    x = jax.random.normal(kx, (batch, seq, model_dim), dtype=jnp.float32)
    bound = 1.0 / (model_dim ** 0.5)
    weight = jax.random.uniform(kw, (vocab_size, model_dim),
                                minval=-bound, maxval=bound, dtype=jnp.float32)
    bias = jax.random.uniform(kb, (vocab_size,),
                              minval=-bound, maxval=bound, dtype=jnp.float32)

    ref = jax.nn.log_softmax(
        jnp.einsum("bsd,vd->bsv", x, weight,
                   precision=jax.lax.Precision.HIGHEST) + bias, axis=-1)

    # Exact (f32) path, tight tolerance.
    out = jax.block_until_ready(
        transformer_generator(x, weight, bias, compute_dtype=jnp.float32))
    assert out.shape == (batch, seq, vocab_size)
    assert jnp.allclose(out, ref, atol=1e-5, rtol=1e-5), \
        float(jnp.max(jnp.abs(out - ref)))

    # Default path (bf16 MXU inputs, f32 softmax epilogue), loose tolerance.
    out_bf16 = jax.block_until_ready(transformer_generator(x, weight, bias))
    assert jnp.allclose(out_bf16, ref, atol=5e-2, rtol=5e-2)

    # --- multi-block test: exercises vocab tiling, two-pass online softmax,
    #     partial-block masking, pinned pass-0 output map, multiple row tiles ---
    b2, s2, d2, v2 = 2, 16, 64, 400
    k1, k2, k3 = jax.random.split(jax.random.PRNGKey(1), 3)
    x2 = jax.random.normal(k1, (b2, s2, d2), dtype=jnp.float32)
    bnd2 = 1.0 / (d2 ** 0.5)
    w2 = jax.random.uniform(k2, (v2, d2), minval=-bnd2, maxval=bnd2, dtype=jnp.float32)
    bias2 = jax.random.uniform(k3, (v2,), minval=-bnd2, maxval=bnd2, dtype=jnp.float32)

    out2 = jax.block_until_ready(
        transformer_generator(x2, w2, bias2, tm=16, tn=128,
                              compute_dtype=jnp.float32))
    ref2 = jax.nn.log_softmax(
        jnp.einsum("bsd,vd->bsv", x2, w2,
                   precision=jax.lax.Precision.HIGHEST) + bias2, axis=-1)
    assert jnp.allclose(out2, ref2, atol=1e-4, rtol=1e-4), \
        float(jnp.max(jnp.abs(out2 - ref2)))

    print("KERNEL_OK")
</pallas_src>

<mosaic_0001>
module attributes {stable_mosaic.version = 11 : i64} {
  func.func @_generator_kernel(%arg0: i32, %arg1: i32, %arg2: i32, %arg3: memref<16x32xf32, #tpu.memory_space<vmem>>, %arg4: memref<32x32xf32, #tpu.memory_space<vmem>>, %arg5: memref<1x32xf32, #tpu.memory_space<vmem>>, %arg6: memref<16x32xf32, #tpu.memory_space<vmem>>, %arg7: memref<16x1xf32, #tpu.memory_space<vmem>>, %arg8: memref<16x1xf32, #tpu.memory_space<vmem>>) attributes {dimension_semantics = [#tpu.dimension_semantics<parallel>, #tpu.dimension_semantics<arbitrary>, #tpu.dimension_semantics<arbitrary>], iteration_bounds = array<i64: 1, 2, 1>, scalar_prefetch = 0 : i64, scratch_operands = 2 : i64, tpu.core_type = #tpu.core_type<tc>, window_params = [{transform_indices = @transform_0, window_bounds = array<i64: 16, 32>}, {transform_indices = @transform_1, window_bounds = array<i64: 32, 32>}, {transform_indices = @transform_2, window_bounds = array<i64: 1, 32>}, {transform_indices = @transform_3, window_bounds = array<i64: 16, 32>}]} {
    %c0 = arith.constant 0 : index
    %c0_0 = arith.constant 0 : index
    %0 = vector.load %arg3[%c0, %c0_0] : memref<16x32xf32, #tpu.memory_space<vmem>>, vector<16x32xf32>
    %c0_1 = arith.constant 0 : index
    %c0_2 = arith.constant 0 : index
    %1 = vector.load %arg4[%c0_1, %c0_2] : memref<32x32xf32, #tpu.memory_space<vmem>>, vector<32x32xf32>
    %cst = arith.constant dense<0.000000e+00> : vector<16x32xf32>
    %2 = tpu.matmul %0, %1, %cst {dimension_numbers = #tpu.dot_dimension_numbers<[1], [1], [0], [0], [0, 0, 1, 0], [], []>} : vector<16x32xf32>, vector<32x32xf32>, vector<16x32xf32> -> vector<16x32xf32>
    %c0_3 = arith.constant 0 : index
    %c0_4 = arith.constant 0 : index
    %3 = vector.load %arg5[%c0_3, %c0_4] : memref<1x32xf32, #tpu.memory_space<vmem>>, vector<1x32xf32>
    %4 = vector.broadcast %3 : vector<1x32xf32> to vector<16x32xf32>
    %5 = arith.addf %2, %4 : vector<16x32xf32>
    %c0_i32 = arith.constant 0 : i32
    %6 = arith.cmpi eq, %arg1, %c0_i32 : i32
    %c0_i32_5 = arith.constant 0 : i32
    %7 = arith.cmpi eq, %arg2, %c0_i32_5 : i32
    %8 = arith.andi %6, %7 : i1
    %9 = arith.extui %8 : i1 to i32
    %c0_i32_6 = arith.constant 0 : i32
    %10 = arith.cmpi ne, %9, %c0_i32_6 : i32
    scf.if %10 {
      %cst_10 = arith.constant 0xFF800000 : f32
      %17 = vector.broadcast %cst_10 : f32 to vector<16x1xf32>
      %c0_11 = arith.constant 0 : index
      %c0_12 = arith.constant 0 : index
      %18 = vector.load %arg7[%c0_11, %c0_12] : memref<16x1xf32, #tpu.memory_space<vmem>>, vector<16x1xf32>
      tpu.vector_store %arg7[%c0_11, %c0_12], %17 {strides = array<i32>} : memref<16x1xf32, #tpu.memory_space<vmem>>, vector<16x1xf32>,
      %cst_13 = arith.constant 0.000000e+00 : f32
      %19 = vector.broadcast %cst_13 : f32 to vector<16x1xf32>
      %c0_14 = arith.constant 0 : index
      %c0_15 = arith.constant 0 : index
      %20 = vector.load %arg8[%c0_14, %c0_15] : memref<16x1xf32, #tpu.memory_space<vmem>>, vector<16x1xf32>
      tpu.vector_store %arg8[%c0_14, %c0_15], %19 {strides = array<i32>} : memref<16x1xf32, #tpu.memory_space<vmem>>, vector<16x1xf32>,
    } else {
    }
    %c0_i32_7 = arith.constant 0 : i32
    %11 = arith.cmpi eq, %arg1, %c0_i32_7 : i32
    %12 = arith.extui %11 : i1 to i32
    %c0_i32_8 = arith.constant 0 : i32
    %13 = arith.cmpi ne, %12, %c0_i32_8 : i32
    scf.if %13 {
      %c0_10 = arith.constant 0 : index
      %c0_11 = arith.constant 0 : index
      %17 = vector.load %arg7[%c0_10, %c0_11] : memref<16x1xf32, #tpu.memory_space<vmem>>, vector<16x1xf32>
      %cst_12 = arith.constant dense<0xFF800000> : vector<16xf32>
      %18 = vector.multi_reduction <maximumf>, %5, %cst_12 [1] : vector<16x32xf32> to vector<16xf32>
      %19 = vector.shape_cast %18 : vector<16xf32> to vector<16x1xf32>
      %20 = arith.maximumf %17, %19 : vector<16x1xf32>
      %c0_13 = arith.constant 0 : index
      %c0_14 = arith.constant 0 : index
      %21 = vector.load %arg8[%c0_13, %c0_14] : memref<16x1xf32, #tpu.memory_space<vmem>>, vector<16x1xf32>
      %22 = arith.subf %17, %20 : vector<16x1xf32>
      %23 = math.exp %22 : vector<16x1xf32>
      %24 = arith.mulf %21, %23 : vector<16x1xf32>
      %25 = vector.broadcast %20 : vector<16x1xf32> to vector<16x32xf32>
      %26 = arith.subf %5, %25 : vector<16x32xf32>
      %27 = math.exp %26 : vector<16x32xf32>
      %cst_15 = arith.constant dense<0.000000e+00> : vector<16xf32>
      %28 = vector.multi_reduction <add>, %27, %cst_15 [1] : vector<16x32xf32> to vector<16xf32>
      %29 = vector.shape_cast %28 : vector<16xf32> to vector<16x1xf32>
      %30 = arith.addf %24, %29 : vector<16x1xf32>
      %c0_16 = arith.constant 0 : index
      %c0_17 = arith.constant 0 : index
      %31 = vector.load %arg8[%c0_16, %c0_17] : memref<16x1xf32, #tpu.memory_space<vmem>>, vector<16x1xf32>
      tpu.vector_store %arg8[%c0_16, %c0_17], %30 {strides = array<i32>} : memref<16x1xf32, #tpu.memory_space<vmem>>, vector<16x1xf32>,
      %c0_18 = arith.constant 0 : index
      %c0_19 = arith.constant 0 : index
      %32 = vector.load %arg7[%c0_18, %c0_19] : memref<16x1xf32, #tpu.memory_space<vmem>>, vector<16x1xf32>
      tpu.vector_store %arg7[%c0_18, %c0_19], %20 {strides = array<i32>} : memref<16x1xf32, #tpu.memory_space<vmem>>, vector<16x1xf32>,
    } else {
    }
    %c1_i32 = arith.constant 1 : i32
    %14 = arith.cmpi eq, %arg1, %c1_i32 : i32
    %15 = arith.extui %14 : i1 to i32
    %c0_i32_9 = arith.constant 0 : i32
    %16 = arith.cmpi ne, %15, %c0_i32_9 : i32
    scf.if %16 {
      %c0_10 = arith.constant 0 : index
      %c0_11 = arith.constant 0 : index
      %17 = vector.load %arg7[%c0_10, %c0_11] : memref<16x1xf32, #tpu.memory_space<vmem>>, vector<16x1xf32>
      %c0_12 = arith.constant 0 : index
      %c0_13 = arith.constant 0 : index
      %18 = vector.load %arg8[%c0_12, %c0_13] : memref<16x1xf32, #tpu.memory_space<vmem>>, vector<16x1xf32>
      %19 = math.log %18 : vector<16x1xf32>
      %20 = arith.addf %17, %19 : vector<16x1xf32>
      %21 = vector.broadcast %20 : vector<16x1xf32> to vector<16x32xf32>
      %22 = arith.subf %5, %21 : vector<16x32xf32>
      %c0_14 = arith.constant 0 : index
      %c0_15 = arith.constant 0 : index
      %23 = vector.load %arg6[%c0_14, %c0_15] : memref<16x32xf32, #tpu.memory_space<vmem>>, vector<16x32xf32>
      tpu.vector_store %arg6[%c0_14, %c0_15], %22 {strides = array<i32>} : memref<16x32xf32, #tpu.memory_space<vmem>>, vector<16x32xf32>,
    } else {
    }
    return
  }
  func.func @transform_0(%arg0: i32, %arg1: i32, %arg2: i32) -> (i32, i32) {
    %c0_i32 = arith.constant 0 : i32
    %c0_i32_0 = arith.constant 0 : i32
    return %arg0, %c0_i32 : i32, i32
  }
  func.func @transform_1(%arg0: i32, %arg1: i32, %arg2: i32) -> (i32, i32) {
    %c0_i32 = arith.constant 0 : i32
    %c0_i32_0 = arith.constant 0 : i32
    return %arg2, %c0_i32 : i32, i32
  }
  func.func @transform_2(%arg0: i32, %arg1: i32, %arg2: i32) -> (i32, i32) {
    %c0_i32 = arith.constant 0 : i32
    %c0_i32_0 = arith.constant 0 : i32
    return %c0_i32, %arg2 : i32, i32
  }
  func.func @transform_3(%arg0: i32, %arg1: i32, %arg2: i32) -> (i32, i32) {
    %0 = arith.muli %arg1, %arg2 : i32
    %c0_i32 = arith.constant 0 : i32
    return %arg0, %0 : i32, i32
  }
}

</mosaic_0001>

<llo_original>
// kernel: tpu_custom_call.1
$region0: #{tpu_custom_call.1}
  #allocation0 [shape = 'u32[]', space=smem, size = 0x4, offset = 0x4, fixed_abs, tag = 'smem constant byte address 0x4 - core index']
  #allocation1 [shape = 'u32[144,128]{1,0:T(1,128)}', space=vmem, size = 0x12000, scoped, tag = 'internal scratch']
  #allocation2 [shape = 'f32[16,1]{1,0:T(8,128)}', space=vmem, size = 0x2000, scoped, tag = 'scratch operand']
  #allocation3 [shape = 'f32[16,1]{1,0:T(8,128)}', space=vmem, size = 0x2000, scoped, tag = 'scratch operand']
  %s0 = inlined_call_operand.hbm [shape: f32[16,32], index: 0, kind: input, shape index: {}]
  %s1 = inlined_call_operand.hbm [shape: f32[32,32], index: 1, kind: input, shape index: {}]
  %s2 = inlined_call_operand.vmem [shape: f32[1,32], index: 2, kind: input, shape index: {}]
  %s3 = inlined_call_operand.hbm [shape: f32[16,32], index: 3, kind: output, shape index: {}]
  %s4 = sld [smem:[#allocation0]]
  $region65: #{tpu_custom_call.1} parent=0
    _
  %s6 = ssub.s32 1, %s4
  %s7 = scalar_select 0, %s6, %s4
  $region1: #{tpu_custom_call.1} parent=0
    #allocation4 [shape = 'u8[8192]{0}', space=vmem, size = 0x2000, scoped, tag = 'input window, operand 0, single buffered']
    #allocation5 [shape = 's32[2]{0}', space=sflag, size = 0x8, scoped, tag = 'scoped memory for tpu_custom_call.1']
    #allocation6 [shape = 's32[2]{0}', space=sflag, size = 0x8, scoped, tag = 'scoped memory for tpu_custom_call.1']
    #allocation7 [shape = 'u8[16384]{0}', space=vmem, size = 0x4000, scoped, tag = 'input window, operand 1, single buffered']
    #allocation8 [shape = 's32[1]{0}', space=sflag, size = 0x4, scoped, tag = 'scoped memory for tpu_custom_call.1']
    #allocation9 [shape = 'u8[16384]{0}', space=vmem, size = 0x4000, scoped, tag = 'output window, operand 0']
    %8 = vsyncpa [#allocation5], 0
    %9 = vsyncpa [#allocation8], 0
    %10 = vsyncpa [#allocation6], 0
    %s11 = scalar_lea.sflag [#allocation6], 1
    %12 = vsyncpa %s11, 0
    loop: start=0, step=1, limit=4
    $region2: #{tpu_custom_call.1} parent=1 // loop_pre_header
      _
    $region3: #{tpu_custom_call.1} parent=1 // loop_header
      %s14 = sphi 0, %s18
      %p15 = scmp.ge.s32.totalorder %s14, 4
      %s21 = sphi 0, %s40
      %s22 = sphi 0, %s36
      %s23 = sphi 0, %s32
      %s24 = sphi 0, %s21
      %s25 = sphi 0, %s22
      %s26 = sphi 0, %s23
      %s27 = sphi 0, %s24
      %s28 = sphi 0, %s25
      %s29 = sphi 0, %s26
      %s43 = sphi 0, %s45
      %s46 = sphi 0, %s43
      %s47 = sphi 0, %s46
      %s63 = sphi 0, %s47
      %s69 = sphi 0, %s71
      %s72 = sphi 0, %s69
      %s73 = sphi 0, %s72
      %s89 = sphi 0, %s73
      %s95 = sphi 0, %s97
      %s98 = sphi 0, %s95
      %s99 = sphi 0, %s98
      %s115 = sphi 0, %s99
      %s125 = sphi 0, %s127
      %s128 = sphi 0, %s125
      %s129 = sphi 0, %s128
      %s145 = sphi 0, %s129
    $region4: #{tpu_custom_call.1} parent=1 // loop_header_branch
      %17 = sbr.rel (%p15) target = $region8
    $region5: #{tpu_custom_call.1} parent=1 // loop_body
      %s19 = ssub.s32 %s14, 1
      %s20 = ssub.s32 %s14, 2
      %s30 = sadd.s32 1, %s23
      %p31 = scmp.ge.s32.totalorder %s30, 1
      %s32 = scalar_select %p31, 0, %s30
      %s33 = sadd.s32 1, %s22
      %s34 = scalar_select %p31, %s33, %s22
      %p35 = scmp.ge.s32.totalorder %s34, 2
      %s36 = scalar_select %p35, 0, %s34
      %s37 = sadd.s32 1, %s21
      %s38 = scalar_select %p35, %s37, %s21
      %p39 = scmp.ge.s32.totalorder %s38, 1
      %s40 = scalar_select %p39, 0, %s38
      %s41 = ssub.s32 %s21, %s40
      %p42 = scmp.eq.s32.totalorder %s41, 0
      %s44 = sadd.s32 %s43, 1
      %s45 = scalar_select %p42, %s43, %s44
      %p48 = pneg %p42
      %p49 = scmp.eq.s32.totalorder %s14, 1
      %p50 = por %p48, %p49
      %p51 = scmp.ne.s32.totalorder %s43, %s46
      %p52 = scmp.eq.s32.totalorder %s14, 0
      %p53 = por %p51, %p52
      %p54 = scmp.ne.s32.totalorder %s43, %s46
      %p55 = scmp.eq.s32.totalorder %s19, 1
      %p56 = por %p54, %p55
      %p57 = scmp.ne.s32.totalorder %s46, %s47
      %p58 = scmp.eq.s32.totalorder %s19, 0
      %p59 = por %p57, %p58
      %p60 = scmp.ne.s32.totalorder %s46, %s47
      %p61 = scmp.eq.s32.totalorder %s20, 1
      %p62 = por %p60, %p61
      %p64 = scmp.ne.s32.totalorder %s47, %s63
      %p65 = scmp.eq.s32.totalorder %s20, 0
      %p66 = por %p64, %p65
      %s67 = ssub.s32 %s23, %s32
      %p68 = scmp.eq.s32.totalorder %s67, 0
      %s70 = sadd.s32 %s69, 1
      %s71 = scalar_select %p68, %s69, %s70
      %p74 = pneg %p68
      %p75 = scmp.eq.s32.totalorder %s14, 1
      %p76 = por %p74, %p75
      %p77 = scmp.ne.s32.totalorder %s69, %s72
      %p78 = scmp.eq.s32.totalorder %s14, 0
      %p79 = por %p77, %p78
      %p80 = scmp.ne.s32.totalorder %s69, %s72
      %p81 = scmp.eq.s32.totalorder %s19, 1
      %p82 = por %p80, %p81
      %p83 = scmp.ne.s32.totalorder %s72, %s73
      %p84 = scmp.eq.s32.totalorder %s19, 0
      %p85 = por %p83, %p84
      %p86 = scmp.ne.s32.totalorder %s72, %s73
      %p87 = scmp.eq.s32.totalorder %s20, 1
      %p88 = por %p86, %p87
      %p90 = scmp.ne.s32.totalorder %s73, %s89
      %p91 = scmp.eq.s32.totalorder %s20, 0
      %p92 = por %p90, %p91
      %s93 = ssub.s32 %s23, %s32
      %p94 = scmp.eq.s32.totalorder %s93, 0
      %s96 = sadd.s32 %s95, 1
      %s97 = scalar_select %p94, %s95, %s96
      %p100 = pneg %p94
      %p101 = scmp.eq.s32.totalorder %s14, 1
      %p102 = por %p100, %p101
      %p103 = scmp.ne.s32.totalorder %s95, %s98
      %p104 = scmp.eq.s32.totalorder %s14, 0
      %p105 = por %p103, %p104
      %p106 = scmp.ne.s32.totalorder %s95, %s98
      %p107 = scmp.eq.s32.totalorder %s19, 1
      %p108 = por %p106, %p107
      %p109 = scmp.ne.s32.totalorder %s98, %s99
      %p110 = scmp.eq.s32.totalorder %s19, 0
      %p111 = por %p109, %p110
      %p112 = scmp.ne.s32.totalorder %s98, %s99
      %p113 = scmp.eq.s32.totalorder %s20, 1
      %p114 = por %p112, %p113
      %p116 = scmp.ne.s32.totalorder %s99, %s115
      %p117 = scmp.eq.s32.totalorder %s20, 0
      %p118 = por %p116, %p117
      %s119 = smul.u32 %s22, %s23
      %s120 = smul.u32 %s36, %s32
      %s121 = ssub.s32 %s21, %s40
      %s122 = ssub.s32 %s119, %s120
      %s123 = sor.u32 %s121, %s122
      %p124 = scmp.eq.s32.totalorder %s123, 0
      %s126 = sadd.s32 %s125, 1
      %s127 = scalar_select %p124, %s125, %s126
      %p130 = pneg %p124
      %p131 = scmp.eq.s32.totalorder %s14, 1
      %p132 = por %p130, %p131
      %p133 = scmp.ne.s32.totalorder %s125, %s128
      %p134 = scmp.eq.s32.totalorder %s14, 0
      %p135 = por %p133, %p134
      %p136 = scmp.ne.s32.totalorder %s125, %s128
      %p137 = scmp.eq.s32.totalorder %s19, 1
      %p138 = por %p136, %p137
      %p139 = scmp.ne.s32.totalorder %s128, %s129
      %p140 = scmp.eq.s32.totalorder %s19, 0
      %p141 = por %p139, %p140
      %p142 = scmp.ne.s32.totalorder %s128, %s129
      %p143 = scmp.eq.s32.totalorder %s20, 1
      %p144 = por %p142, %p143
      %p146 = scmp.ne.s32.totalorder %s129, %s145
      %p147 = scmp.eq.s32.totalorder %s20, 0
      %p148 = por %p146, %p147
      %p149 = scmp.le.s32.totalorder 1, %s14
      %p150 = scmp.lt.s32.totalorder %s14, 3
      %p151 = pnand %p149, %p150
      %p152 = pneg %p151
      // Predicated region
      $region9: #{tpu_custom_call.1} parent=5 // pred_check
        _
      $region10: #{tpu_custom_call.1} parent=5 // pred_check_branch
        %154 = sbr.rel (%p151) target = $region12
      $region11: #{tpu_custom_call.1} parent=5 // pred_region
        %s155 = ssub.s32 %s14, 1
        // Predicated region
        $region13: #{tpu_custom_call.1} parent=11 // pred_check
          %p156 = pneg %p59
        $region14: #{tpu_custom_call.1} parent=11 // pred_check_branch
          %158 = sbr.rel (%p156) target = $region16
        $region15: #{tpu_custom_call.1} parent=11 // pred_region
          %s159 = smul.u32 2, %s24
          %s161 = ssub.s32 256, 256
          %162 = vsyncadd [#allocation5], %s161
          %s163 = smul.addr %s159, 128
          %s164 = scalar_lea.hbm %s0, %s163
          %s165 = sshll.u32 [#allocation4], 4
          %s166 = int_to_ptr.vmem [resolvable:$true] %s165
          %171 = dma.hbm_to_vmem [thread:$0]  %s164, 256, %s166, [#allocation5], 128, 128, 8
        $region16: #{tpu_custom_call.1} parent=11 // pred_fallthru
          _
        // Predicated region
        $region17: #{tpu_custom_call.1} parent=11 // pred_check
          %p172 = pneg %p85
        $region18: #{tpu_custom_call.1} parent=11 // pred_check_branch
          %174 = sbr.rel (%p172) target = $region20
        $region19: #{tpu_custom_call.1} parent=11 // pred_region
          %s175 = smul.u32 4, %s26
          %s177 = ssub.s32 512, 512
          %178 = vsyncadd [#allocation8], %s177
          %s179 = smul.addr %s175, 128
          %s180 = scalar_lea.hbm %s1, %s179
          %s181 = sshll.u32 [#allocation7], 4
          %s182 = int_to_ptr.vmem [resolvable:$true] %s181
          %187 = dma.hbm_to_vmem [thread:$0]  %s180, 512, %s182, [#allocation8], 128, 128, 8
        $region20: #{tpu_custom_call.1} parent=11 // pred_fallthru
          _
        // Predicated region
        $region21: #{tpu_custom_call.1} parent=11 // pred_check
          %p188 = pneg %p111
        $region22: #{tpu_custom_call.1} parent=11 // pred_check_branch
          %190 = sbr.rel (%p188) target = $region24
        $region23: #{tpu_custom_call.1} parent=11 // pred_region
          %p191 = scmp.lt.s32.totalorder %s26, 0
          %s192 = scalar_select %p191, %s26, 0
          %s193 = scalar_lea.vmem %s2, %s192
        $region24: #{tpu_custom_call.1} parent=11 // pred_fallthru
          _
      $region12: #{tpu_custom_call.1} parent=5 // pred_fallthru
        _
      %p194 = scmp.lt.s32.totalorder %s14, 2
      // Predicated region
      $region25: #{tpu_custom_call.1} parent=5 // pred_check
        %p195 = pneg %p194
      $region26: #{tpu_custom_call.1} parent=5 // pred_check_branch
        %197 = sbr.rel (%p195) target = $region28
      $region27: #{tpu_custom_call.1} parent=5 // pred_region
        _
      $region28: #{tpu_custom_call.1} parent=5 // pred_fallthru
        _
      %p198 = scmp.le.s32.totalorder 1, %s14
      %p199 = scmp.lt.s32.totalorder %s14, 3
      %p200 = pnand %p198, %p199
      %p201 = pneg %p200
      // Predicated region
      $region29: #{tpu_custom_call.1} parent=5 // pred_check
        _
      $region30: #{tpu_custom_call.1} parent=5 // pred_check_branch
        %203 = sbr.rel (%p200) target = $region32
      $region31: #{tpu_custom_call.1} parent=5 // pred_region
        %s204 = ssub.s32 %s14, 1
        // Predicated region
        $region33: #{tpu_custom_call.1} parent=31 // pred_check
          %p205 = pneg %p59
        $region34: #{tpu_custom_call.1} parent=31 // pred_check_branch
          %207 = sbr.rel (%p205) target = $region36
        $region35: #{tpu_custom_call.1} parent=31 // pred_region
          %208 = dma.done [#allocation5], 256
        $region36: #{tpu_custom_call.1} parent=31 // pred_fallthru
          _
        // Predicated region
        $region37: #{tpu_custom_call.1} parent=31 // pred_check
          %p209 = pneg %p85
        $region38: #{tpu_custom_call.1} parent=31 // pred_check_branch
          %211 = sbr.rel (%p209) target = $region40
        $region39: #{tpu_custom_call.1} parent=31 // pred_region
          %212 = dma.done [#allocation8], 512
        $region40: #{tpu_custom_call.1} parent=31 // pred_fallthru
          _
        %p213 = pneg %p59
        %p214 = pneg %p56
        %p215 = pneg %p85
        %p216 = pneg %p82
        %p217 = scmp.lt.s32.totalorder %s26, 0
        %s218 = scalar_select %p217, %s26, 0
        %s219 = scalar_lea.vmem %s2, %s218
        %p220 = pneg %p111
        %p221 = pneg %p108
        %p222 = pneg %p141
        %p223 = pneg %p138
        %s224 = sand.u32 %s128, 1
        %s225 = scalar_lea.sflag [#allocation6], %s224
        %s226 = sand.u32 %s128, 1
        %s227 = smul.addr %s226, 16
        %s228 = scalar_lea.vmem [#allocation9], %s227
        %s229 = smul.u32 2, %s24
        %s230 = smul.u32 4, %s26
        %p231 = scmp.lt.s32.totalorder %s26, 0
        %s232 = scalar_select %p231, %s26, 0
        %s233 = scalar_lea.vmem %s2, %s232
        %s234 = smul.u32 %s25, %s26
        %s235 = smul.u32 2, %s24
        %v236 = vld [vmem:[#allocation4] sm:$0xff]
        %v237 = vld [vmem:[#allocation4 + $0x8] sm:$0xff]
        %v238 = vld [vmem:[#allocation7] sm:$0xff]
        %v239 = vld [vmem:[#allocation7 + $0x8] sm:$0xff]
        %v240 = vld [vmem:[#allocation7 + $0x10] sm:$0xff]
        %v241 = vld [vmem:[#allocation7 + $0x18] sm:$0xff]
        %v242 = vld [vmem:[%s233] sm:$0x1]
        %v244 = vlaneseq
        %v245 = vshrl.u32 %v244, 7
        %v246 = vsub.s32 0, %v245
        %v247 = vrot.slane %v242, %v246
        %vm249 = vcmask 261120
        %v251 = vsel %vm249, %v236, 0
        %v254 = vsel %vm249, %v237, 0
        %v257 = vsel %vm249, %v238, 0
        %v260 = vsel %vm249, %v239, 0
        %v263 = vsel %vm249, %v240, 0
        %v266 = vsel %vm249, %v241, 0
        %268 = vmatprep.subr.mxu0 0.0
        %269 = vmatpush1.xpose.msra.mxu0 %v257
        %270 = vmatprep.subr.mxu0 0.0
        %271 = vmatpush1.xpose.msra.mxu0 %v260
        %272 = vmatprep.subr.mxu0 0.0
        %273 = vmatpush1.xpose.msra.mxu0 %v263
        %274 = vmatprep.subr.mxu0 0.0
        %275 = vmatpush1.xpose.msra.mxu0 %v266
        %276 = vmatprep.subr.mxu0 0.0
        %277 = vmatpush1.xpose.msra.mxu0 0.0
        %278 = vmatprep.subr.mxu0 0.0
        %279 = vmatpush1.xpose.msra.mxu0 0.0
        %280 = vmatprep.subr.mxu0 0.0
        %281 = vmatpush1.xpose.msra.mxu0 0.0
        %282 = vmatprep.subr.mxu0 0.0
        %283 = vmatpush1.xpose.msra.mxu0 0.0
        %284 = vmatprep.subr.mxu0 0.0
        %285 = vmatpush1.xpose.msra.mxu0 0.0
        %286 = vmatprep.subr.mxu0 0.0
        %287 = vmatpush1.xpose.msra.mxu0 0.0
        %288 = vmatprep.subr.mxu0 0.0
        %289 = vmatpush1.xpose.msra.mxu0 0.0
        %290 = vmatprep.subr.mxu0 0.0
        %291 = vmatpush1.xpose.msra.mxu0 0.0
        %292 = vmatprep.subr.mxu0 0.0
        %293 = vmatpush1.xpose.msra.mxu0 0.0
        %294 = vmatprep.subr.mxu0 0.0
        %295 = vmatpush1.xpose.msra.mxu0 0.0
        %296 = vmatprep.subr.mxu0 0.0
        %297 = vmatpush1.xpose.msra.mxu0 0.0
        %298 = vmatprep.subr.mxu0 0.0
        %299 = vmatpush1.xpose.msra.mxu0 0.0
        %300 = vmatprep.subr.mxu0 0.0
        %301 = vmatpush1.xpose.msra.mxu0 0.0
        %302 = vmatprep.subr.mxu0 0.0
        %303 = vmatpush1.xpose.msra.mxu0 0.0
        %304 = vmatprep.subr.mxu0 0.0
        %305 = vmatpush1.xpose.msra.mxu0 0.0
        %306 = vmatprep.subr.mxu0 0.0
        %307 = vmatpush1.xpose.msra.mxu0 0.0
        %308 = vmatprep.subr.mxu0 0.0
        %309 = vmatpush1.xpose.msra.mxu0 0.0
        %310 = vmatprep.subr.mxu0 0.0
        %311 = vmatpush1.xpose.msra.mxu0 0.0
        %312 = vmatprep.subr.mxu0 0.0
        %313 = vmatpush1.xpose.msra.mxu0 0.0
        %314 = vmatprep.subr.mxu0 0.0
        %315 = vmatpush1.xpose.msra.mxu0 0.0
        %316 = vmatprep.subr.mxu0 0.0
        %317 = vmatpush1.xpose.msra.mxu0 0.0
        %318 = vmatprep.subr.mxu0 0.0
        %319 = vmatpush1.xpose.msra.mxu0 0.0
        %320 = vmatprep.subr.mxu0 0.0
        %321 = vmatpush1.xpose.msra.mxu0 0.0
        %322 = vmatprep.subr.mxu0 0.0
        %323 = vmatpush1.xpose.msra.mxu0 0.0
        %324 = vmatprep.subr.mxu0 0.0
        %325 = vmatpush1.xpose.msra.mxu0 0.0
        %326 = vmatprep.subr.mxu0 0.0
        %327 = vmatpush1.xpose.msra.mxu0 0.0
        %328 = vmatprep.subr.mxu0 0.0
        %329 = vmatpush1.xpose.msra.mxu0 0.0
        %330 = vmatprep.subr.mxu0 0.0
        %331 = vmatpush1.xpose.msra.mxu0 0.0
        %332 = vmatprep.mubr.f32.mxu0 0.0
        %333 = vmatmul.mubr.f32.gmra.mrb[0].mxu0 %v251
        %v334 = vpop.f32.mrb[0].mxu0
        %v335 = vadd.f32 %v247, %v334
        %v336 = vpop.f32.mrb[0].mxu0
        %337 = vmatprep.mubr.f32.mxu0 0.0
        %338 = vmatmul.mubr.f32.gmra.mrb[0].mxu0 %v254
        %v339 = vpop.f32.mrb[0].mxu0
        %v340 = vadd.f32 %v247, %v339
        %v341 = vpop.f32.mrb[0].mxu0
        %342 = vdwg.mxu0
        %p343 = scmp.eq.s32.totalorder %s25, 0
        %p344 = scmp.eq.s32.totalorder %s26, 0
        %p345 = pnand %p343, %p344
        %p346 = pneg %p345
        // Predicated region
        $region41: #{tpu_custom_call.1} parent=31 // pred_check
          _
        $region42: #{tpu_custom_call.1} parent=31 // pred_check_branch
          %348 = sbr.rel (%p345) target = $region44
        $region43: #{tpu_custom_call.1} parent=31 // pred_region
          %vm349 = vcmask 7168
          %350 = vst.msk [vmem:[#allocation2] sm:$0xff] %vm349, -inf
          %351 = vst.msk [vmem:[#allocation2 + $0x8] sm:$0xff] %vm349, -inf
          %352 = vst.msk [vmem:[#allocation3] sm:$0xff] %vm349, 0.0
          %353 = vst.msk [vmem:[#allocation3 + $0x8] sm:$0xff] %vm349, 0.0
        $region44: #{tpu_custom_call.1} parent=31 // pred_fallthru
          _
        // Predicated region
        $region45: #{tpu_custom_call.1} parent=31 // pred_check
          %p354 = pneg %p343
        $region46: #{tpu_custom_call.1} parent=31 // pred_check_branch
          %356 = sbr.rel (%p354) target = $region48
        $region47: #{tpu_custom_call.1} parent=31 // pred_region
          %v357 = vld [vmem:[#allocation2] sm:$0xff]
          %v358 = vld [vmem:[#allocation2 + $0x8] sm:$0xff]
          %v359 = vsel %vm249, %v335, -inf
          %360 = vmax.xlane.f32.xlu0 %v359
          %v361 = vpop.xlane.xlu0 %360
          %v362 = vsel %vm249, %v340, -inf
          %363 = vmax.xlane.f32.xlu0 %v362
          %v364 = vpop.xlane.xlu0 %363
          %v365 = vmax.f32 %v357, %v361
          %v366 = vmax.f32 %v358, %v364
          %v367 = vld [vmem:[#allocation3] sm:$0xff]
          %v368 = vld [vmem:[#allocation3 + $0x8] sm:$0xff]
          %v369 = vsub.f32 %v357, %v365
          %v370 = vsub.f32 %v358, %v366
          %v371 = vmul.f32 %v369, 1.442695
          %v372 = vpow.pop %v371
          %v373 = vmul.f32 %v370, 1.442695
          %v374 = vpow.pop %v373
          %v375 = vmul.f32 %v367, %v372
          %v376 = vmul.f32 %v368, %v374
          %378 = vset.pattern.permute.xlu0 0
          %379 = vperm.xlu0 %378, %v365
          %v380 = vpop.permute.xlu0 %379
          %383 = vset.pattern.permute.xlu0 0
          %384 = vperm.xlu0 %383, %v366
          %v385 = vpop.permute.xlu0 %384
          %v387 = vsub.f32 %v335, %v380
          %v388 = vsub.f32 %v340, %v385
          %v389 = vmul.f32 %v387, 1.442695
          %v390 = vpow.pop %v389
          %v391 = vmul.f32 %v388, 1.442695
          %v392 = vpow.pop %v391
          %v393 = vsel %vm249, %v390, 0.0
          %394 = vadd.xlane.f32.xlu0 %v393
          %v395 = vpop.xlane.xlu0 %394
          %v396 = vsel %vm249, %v392, 0.0
          %397 = vadd.xlane.f32.xlu0 %v396
          %v398 = vpop.xlane.xlu0 %397
          %v399 = vadd.f32 %v375, %v395
          %v400 = vadd.f32 %v376, %v398
          %vm401 = vcmask 7168
          %402 = vst.msk [vmem:[#allocation3] sm:$0xff] %vm401, %v399
          %403 = vst.msk [vmem:[#allocation3 + $0x8] sm:$0xff] %vm401, %v400
          %404 = vst.msk [vmem:[#allocation2] sm:$0xff] %vm401, %v365
          %405 = vst.msk [vmem:[#allocation2 + $0x8] sm:$0xff] %vm401, %v366
        $region48: #{tpu_custom_call.1} parent=31 // pred_fallthru
          _
        %p406 = scmp.eq.s32.totalorder %s25, 1
        // Predicated region
        $region49: #{tpu_custom_call.1} parent=31 // pred_check
          %p407 = pneg %p406
        $region50: #{tpu_custom_call.1} parent=31 // pred_check_branch
          %409 = sbr.rel (%p407) target = $region52
        $region51: #{tpu_custom_call.1} parent=31 // pred_region
          %v410 = vld [vmem:[#allocation2] sm:$0xff]
          %v411 = vld [vmem:[#allocation2 + $0x8] sm:$0xff]
          %v412 = vld [vmem:[#allocation3] sm:$0xff]
          %v413 = vld [vmem:[#allocation3 + $0x8] sm:$0xff]
          %v414 = vlog2.pop %v412
          %v415 = vmul.f32 %v414, 0.6931472
          %v416 = vlog2.pop %v413
          %v417 = vmul.f32 %v416, 0.6931472
          %v418 = vadd.f32 %v410, %v415
          %v419 = vadd.f32 %v411, %v417
          %421 = vset.pattern.permute.xlu0 0
          %422 = vperm.xlu0 %421, %v418
          %v423 = vpop.permute.xlu0 %422
          %426 = vset.pattern.permute.xlu0 0
          %427 = vperm.xlu0 %426, %v419
          %v428 = vpop.permute.xlu0 %427
          %v430 = vsub.f32 %v335, %v423
          %v431 = vsub.f32 %v340, %v428
          %432 = vst.msk [vmem:[%s228] sm:$0xff] %vm249, %v430
          %433 = vst.msk [vmem:[%s228 + $0x8] sm:$0xff] %vm249, %v431
        $region52: #{tpu_custom_call.1} parent=31 // pred_fallthru
          _
        %s434 = sand.u32 %s128, 1
        %s435 = scalar_lea.sflag [#allocation6], %s434
        %s436 = sand.u32 %s128, 1
        %s437 = smul.addr %s436, 16
        %s438 = scalar_lea.vmem [#allocation9], %s437
        // Predicated region
        $region53: #{tpu_custom_call.1} parent=31 // pred_check
          %p439 = pneg %p138
        $region54: #{tpu_custom_call.1} parent=31 // pred_check_branch
          %441 = sbr.rel (%p439) target = $region56
        $region55: #{tpu_custom_call.1} parent=31 // pred_region
          %s442 = smul.u32 %s25, %s26
          %s443 = smul.u32 2, %s24
          %s445 = ssub.s32 256, 256
          %446 = vsyncadd %s435, %s445
          %s447 = sadd.s32 %s442, %s443
          %s448 = smul.addr %s447, 128
          %s449 = scalar_lea.hbm %s3, %s448
          %s450 = sshll.u32 %s438, 4
          %s451 = int_to_ptr.vmem [resolvable:$true] %s450
          %456 = dma.vmem_to_hbm [thread:$0]  %s451, 256, %s449, %s435, 128, 128, 8
        $region56: #{tpu_custom_call.1} parent=31 // pred_fallthru
          _
      $region32: #{tpu_custom_call.1} parent=5 // pred_fallthru
        _
      %p457 = scmp.le.s32.totalorder 2, %s14
      // Predicated region
      $region57: #{tpu_custom_call.1} parent=5 // pred_check
        %p458 = pneg %p457
      $region58: #{tpu_custom_call.1} parent=5 // pred_check_branch
        %460 = sbr.rel (%p458) target = $region60
      $region59: #{tpu_custom_call.1} parent=5 // pred_region
        %s461 = ssub.s32 %s14, 2
        // Predicated region
        $region61: #{tpu_custom_call.1} parent=59 // pred_check
          %p462 = pneg %p144
        $region62: #{tpu_custom_call.1} parent=59 // pred_check_branch
          %464 = sbr.rel (%p462) target = $region64
        $region63: #{tpu_custom_call.1} parent=59 // pred_region
          %s465 = sand.u32 %s129, 1
          %s466 = scalar_lea.sflag [#allocation6], %s465
          %s467 = sand.u32 %s129, 1
          %s468 = smul.addr %s467, 16
          %s469 = scalar_lea.vmem [#allocation9], %s468
          %470 = dma.done %s466, 256
        $region64: #{tpu_custom_call.1} parent=59 // pred_fallthru
          _
      $region60: #{tpu_custom_call.1} parent=5 // pred_fallthru
        _
    $region6: #{tpu_custom_call.1} parent=1 // loop_footer
      %s18 = sadd.s32 1, %s14
    $region7: #{tpu_custom_call.1} parent=1 // loop_footer_branch
      %13 = sbr.rel target = $region3
    $region8: #{tpu_custom_call.1} parent=1 // loop_exit
      _
    %471 = vsyncpa [#allocation5], 1
    %s472 = scalar_lea.sflag [#allocation5], 1
    %473 = vsyncpa %s472, 1
    %474 = vsyncpa [#allocation8], 1
    %475 = vsyncpa [#allocation6], 1
    %s476 = scalar_lea.sflag [#allocation6], 1
    %477 = vsyncpa %s476, 1

</llo_original>
